<compile_context>
chip_gen: v6e
topology: v6e:2x2x1
jax: 0.10.0
libtpu: 0.0.40
codegen_flags: <defaults>
</compile_context>

<pallas_src>
import functools

import jax
import jax.numpy as jnp
from jax import lax
from jax.experimental import pallas as pl
from jax.experimental.pallas import tpu as pltpu


# ----------------------------------------------------------------------------
# Kernel
# ----------------------------------------------------------------------------
def _prelu(x, alpha):
    """PReLU with a single shared slope (PyTorch nn.PReLU default)."""
    return jnp.where(x >= 0, x, alpha * x)


def _conv1d_k3_im2col(h, w_col_ref, b_ref, compute_dtype):
    """Conv1d(kernel=3, stride=1, padding=1) as one im2col matmul.

    h:         [T, Cin]  f32 activations (time on sublanes, channels on lanes)
    w_col_ref: [3*Cin, Cout]  (rows ordered tap-major: k=0 | k=1 | k=2)
    b_ref:     [1, Cout] f32
    returns    [T, Cout] f32
    """
    T = h.shape[0]
    t = lax.broadcasted_iota(jnp.int32, (T, 1), 0)
    # h_prev[t] = h[t-1] (zero at t=0); h_next[t] = h[t+1] (zero at t=T-1).
    h_prev = jnp.where(t > 0, pltpu.roll(h, shift=1, axis=0), 0.0)
    h_next = jnp.where(t < T - 1, pltpu.roll(h, shift=(T - 1) % T, axis=0), 0.0)
    x_col = jnp.concatenate([h_prev, h, h_next], axis=1).astype(compute_dtype)
    acc = jnp.dot(x_col, w_col_ref[...], preferred_element_type=jnp.float32)
    return acc + b_ref[...]


def encoder_cnn_kernel(alpha_ref,                     # SMEM (3,) PReLU slopes
                       x_ref,                         # VMEM [T, n_feats]
                       w1_ref, b1_ref,
                       w2_ref, b2_ref,
                       w3_ref, b3_ref,
                       w4_ref, b4_ref,
                       o_ref,                         # VMEM [n_latent, T]
                       *, compute_dtype):
    h = x_ref[...].astype(jnp.float32)                              # [T, n_feats]

    h = _prelu(_conv1d_k3_im2col(h, w1_ref, b1_ref, compute_dtype), alpha_ref[0])
    h = _prelu(_conv1d_k3_im2col(h, w2_ref, b2_ref, compute_dtype), alpha_ref[1])
    h = _prelu(_conv1d_k3_im2col(h, w3_ref, b3_ref, compute_dtype), alpha_ref[2])
    h = _conv1d_k3_im2col(h, w4_ref, b4_ref, compute_dtype)          # [T, n_latent]

    # Emit PyTorch's channels-first layout directly (XLU transpose in-kernel).
    o_ref[...] = jnp.transpose(h).astype(o_ref.dtype)                # [n_latent, T]


# ----------------------------------------------------------------------------
# Parameter prep (done ONCE, outside the per-call path)
# ----------------------------------------------------------------------------
def prepare_kernel_params(params):
    """[Cout, Cin, 3] PyTorch conv weights -> [3*Cin, Cout] im2col matrices."""
    prepped = {"alphas": params["alphas"].astype(jnp.float32)}
    for i in (1, 2, 3, 4):
        w = params[f"w{i}"]                          # [Cout, Cin, 3]
        cout, cin, k = w.shape
        prepped[f"w{i}"] = jnp.transpose(w, (2, 1, 0)).reshape(k * cin, cout)
        prepped[f"b{i}"] = params[f"b{i}"].reshape(1, cout).astype(jnp.float32)
    return prepped


# ----------------------------------------------------------------------------
# Wrapper
# ----------------------------------------------------------------------------
@functools.partial(jax.jit, static_argnames=("compute_dtype",))
def encoder_cnn_forward(x, prepped, *, compute_dtype=jnp.float32):
    """x: [bs, n_times, n_feats] -> [bs, n_latent, n_times] (matches PyTorch)."""
    B, T, n_feats = x.shape
    n_latent = prepped["w4"].shape[1]

    kernel_args = []
    weight_specs = []
    flops = 0
    bytes_accessed = 4 * (B * T * n_feats + B * n_latent * T)
    for i in (1, 2, 3, 4):
        w = prepped[f"w{i}"].astype(compute_dtype)    # [3*Cin, Cout]
        b = prepped[f"b{i}"]                          # [1, Cout]
        kcin, cout = w.shape
        kernel_args += [w, b]
        # Constant index_map -> weights stay resident in VMEM across grid steps.
        weight_specs.append(pl.BlockSpec((kcin, cout), lambda bb: (0, 0)))
        weight_specs.append(pl.BlockSpec((1, cout), lambda bb: (0, 0)))
        flops += 2 * B * T * kcin * cout
        bytes_accessed += w.dtype.itemsize * kcin * cout + 4 * cout

    out = pl.pallas_call(
        functools.partial(encoder_cnn_kernel, compute_dtype=compute_dtype),
        out_shape=jax.ShapeDtypeStruct((B, n_latent, T), jnp.float32),
        grid=(B,),
        in_specs=[pl.BlockSpec(memory_space=pltpu.MemorySpace.SMEM)]       # alphas
                 + [pl.BlockSpec((None, T, n_feats), lambda bb: (bb, 0, 0))]  # x
                 + weight_specs,
        out_specs=pl.BlockSpec((None, n_latent, T), lambda bb: (bb, 0, 0)),
        compiler_params=pltpu.CompilerParams(
            dimension_semantics=("parallel",),          # megacore over batch (v7x)
            vmem_limit_bytes=32 * 1024 * 1024),
        cost_estimate=pl.CostEstimate(flops=flops, transcendentals=0,
                                      bytes_accessed=bytes_accessed),
    )(prepped["alphas"], x, *kernel_args)
    return out


# ----------------------------------------------------------------------------
# Deterministic parameter init (mirrors EncoderCNN.__init__ / init_weights)
# ----------------------------------------------------------------------------
def init_params(key, n_feats, n_latent):
    h1, h2, h3 = n_feats // 2, n_feats // 4, n_feats // 8
    n_ker = 3
    dims = [(h1, n_feats), (h2, h1), (h3, h2), (n_latent, h3)]
    params = {"alphas": jnp.full((3,), 0.25, jnp.float32)}   # nn.PReLU() default
    for i, (cout, cin) in enumerate(dims, start=1):
        key, kw, kb = jax.random.split(key, 3)
        fan_in, fan_out = cin * n_ker, cout * n_ker
        std = (2.0 / (fan_in + fan_out)) ** 0.5              # xavier_normal_
        params[f"w{i}"] = std * jax.random.normal(kw, (cout, cin, n_ker), jnp.float32)
        bound = 1.0 / (fan_in ** 0.5)                        # Conv1d default bias init
        params[f"b{i}"] = jax.random.uniform(kb, (cout,), jnp.float32, -bound, bound)
    return params


# ----------------------------------------------------------------------------
# Pure-JAX reference (for correctness check)
# ----------------------------------------------------------------------------
def reference_forward(x, params):
    out = jnp.transpose(x, (0, 2, 1))                        # [B, C, L]
    alphas = params["alphas"]
    for i in (1, 2, 3, 4):
        w, b = params[f"w{i}"], params[f"b{i}"]
        out = lax.conv_general_dilated(
            out, w, window_strides=(1,), padding=[(1, 1)],
            dimension_numbers=("NCH", "OIH", "NCH"))
        out = out + b[None, :, None]
        if i < 4:
            a = alphas[i - 1]
            out = jnp.where(out >= 0, out, a * out)
    return out


# ----------------------------------------------------------------------------
if __name__ == "__main__":
    bs, n_times, n_feats, n_latent = 2, 8, 32, 16

    key = jax.random.PRNGKey(0)
    key, kx = jax.random.split(key)
    x = jax.random.normal(kx, (bs, n_times, n_feats), jnp.float32)

    params = init_params(key, n_feats, n_latent)
    prepped = prepare_kernel_params(params)

    out = jax.block_until_ready(encoder_cnn_forward(x, prepped))
    assert out.shape == (bs, n_latent, n_times), out.shape

    ref = jax.block_until_ready(reference_forward(x, params))
    assert jnp.allclose(out, ref, atol=1e-4, rtol=1e-4), float(jnp.abs(out - ref).max())

    print("KERNEL_OK")
</pallas_src>

<mosaic_0001>
module attributes {stable_mosaic.version = 11 : i64} {
  func.func @encoder_cnn_kernel(%arg0: i32, %arg1: memref<3xf32, #tpu.memory_space<smem>>, %arg2: memref<1x8x32xf32, #tpu.memory_space<vmem>>, %arg3: memref<96x16xf32, #tpu.memory_space<vmem>>, %arg4: memref<1x16xf32, #tpu.memory_space<vmem>>, %arg5: memref<48x8xf32, #tpu.memory_space<vmem>>, %arg6: memref<1x8xf32, #tpu.memory_space<vmem>>, %arg7: memref<24x4xf32, #tpu.memory_space<vmem>>, %arg8: memref<1x4xf32, #tpu.memory_space<vmem>>, %arg9: memref<12x16xf32, #tpu.memory_space<vmem>>, %arg10: memref<1x16xf32, #tpu.memory_space<vmem>>, %arg11: memref<1x16x8xf32, #tpu.memory_space<vmem>>) attributes {dimension_semantics = [#tpu.dimension_semantics<parallel>], iteration_bounds = array<i64: 2>, scalar_prefetch = 0 : i64, scratch_operands = 0 : i64, tpu.core_type = #tpu.core_type<tc>, window_params = [{transform_indices = @transform_0, window_bounds = array<i64: 3>}, {transform_indices = @transform_1, window_bounds = array<i64: 1, 8, 32>}, {pipeline_mode = #tpu.pipeline_mode<synchronous>, transform_indices = @transform_2, window_bounds = array<i64: 96, 16>}, {pipeline_mode = #tpu.pipeline_mode<synchronous>, transform_indices = @transform_3, window_bounds = array<i64: 1, 16>}, {pipeline_mode = #tpu.pipeline_mode<synchronous>, transform_indices = @transform_4, window_bounds = array<i64: 48, 8>}, {pipeline_mode = #tpu.pipeline_mode<synchronous>, transform_indices = @transform_5, window_bounds = array<i64: 1, 8>}, {pipeline_mode = #tpu.pipeline_mode<synchronous>, transform_indices = @transform_6, window_bounds = array<i64: 24, 4>}, {pipeline_mode = #tpu.pipeline_mode<synchronous>, transform_indices = @transform_7, window_bounds = array<i64: 1, 4>}, {pipeline_mode = #tpu.pipeline_mode<synchronous>, transform_indices = @transform_8, window_bounds = array<i64: 12, 16>}, {pipeline_mode = #tpu.pipeline_mode<synchronous>, transform_indices = @transform_9, window_bounds = array<i64: 1, 16>}, {transform_indices = @transform_10, window_bounds = array<i64: 1, 16, 8>}]} {
    %c0 = arith.constant 0 : index
    %c0_0 = arith.constant 0 : index
    %c0_1 = arith.constant 0 : index
    %0 = vector.load %arg2[%c0, %c0_0, %c0_1] : memref<1x8x32xf32, #tpu.memory_space<vmem>>, vector<1x8x32xf32>
    %1 = vector.shape_cast %0 : vector<1x8x32xf32> to vector<8x32xf32>
    %2 = tpu.iota {dimensions = array<i32: 0>} : vector<8x1xi32>
    %c0_i32 = arith.constant 0 : i32
    %3 = vector.broadcast %c0_i32 : i32 to vector<8x1xi32>
    %4 = arith.cmpi sgt, %2, %3 : vector<8x1xi32>
    %c1_i32 = arith.constant 1 : i32
    %5 = tpu.dynamic_rotate %1 by %c1_i32 dim 0 : vector<8x32xf32>, i32 -> vector<8x32xf32>
    %cst = arith.constant 0.000000e+00 : f32
    %6 = vector.shape_cast %4 : vector<8x1xi1> to vector<8x1xi1>
    %7 = vector.broadcast %6 : vector<8x1xi1> to vector<8x32xi1>
    %8 = vector.broadcast %cst : f32 to vector<8x32xf32>
    %9 = arith.select %7, %5, %8 : vector<8x32xi1>, vector<8x32xf32>
    %c7_i32 = arith.constant 7 : i32
    %10 = vector.broadcast %c7_i32 : i32 to vector<8x1xi32>
    %11 = arith.cmpi slt, %2, %10 : vector<8x1xi32>
    %c7_i32_2 = arith.constant 7 : i32
    %12 = tpu.dynamic_rotate %1 by %c7_i32_2 dim 0 : vector<8x32xf32>, i32 -> vector<8x32xf32>
    %cst_3 = arith.constant 0.000000e+00 : f32
    %13 = vector.shape_cast %11 : vector<8x1xi1> to vector<8x1xi1>
    %14 = vector.broadcast %13 : vector<8x1xi1> to vector<8x32xi1>
    %15 = vector.broadcast %cst_3 : f32 to vector<8x32xf32>
    %16 = arith.select %14, %12, %15 : vector<8x32xi1>, vector<8x32xf32>
    %17 = tpu.concatenate %9, %1, %16 in 1 : vector<8x32xf32>, vector<8x32xf32>, vector<8x32xf32> -> vector<8x96xf32>
    %c0_4 = arith.constant 0 : index
    %c0_5 = arith.constant 0 : index
    %18 = vector.load %arg3[%c0_4, %c0_5] : memref<96x16xf32, #tpu.memory_space<vmem>>, vector<96x16xf32>
    %cst_6 = arith.constant dense<0.000000e+00> : vector<8x16xf32>
    %19 = tpu.matmul %17, %18, %cst_6 {dimension_numbers = #tpu.dot_dimension_numbers<[1], [0], [0], [1], [0, 0, 1, 1], [], []>} : vector<8x96xf32>, vector<96x16xf32>, vector<8x16xf32> -> vector<8x16xf32>
    %c0_7 = arith.constant 0 : index
    %c0_8 = arith.constant 0 : index
    %20 = vector.load %arg4[%c0_7, %c0_8] : memref<1x16xf32, #tpu.memory_space<vmem>>, vector<1x16xf32>
    %21 = vector.broadcast %20 : vector<1x16xf32> to vector<8x16xf32>
    %22 = arith.addf %19, %21 : vector<8x16xf32>
    %c0_9 = arith.constant 0 : index
    %23 = memref.load %arg1[%c0_9] : memref<3xf32, #tpu.memory_space<smem>>
    %cst_10 = arith.constant 0.000000e+00 : f32
    %24 = vector.broadcast %cst_10 : f32 to vector<8x16xf32>
    %25 = arith.cmpf oge, %22, %24 : vector<8x16xf32>
    %26 = vector.broadcast %23 : f32 to vector<8x16xf32>
    %27 = arith.mulf %26, %22 : vector<8x16xf32>
    %28 = arith.select %25, %22, %27 : vector<8x16xi1>, vector<8x16xf32>
    %29 = tpu.iota {dimensions = array<i32: 0>} : vector<8x1xi32>
    %c0_i32_11 = arith.constant 0 : i32
    %30 = vector.broadcast %c0_i32_11 : i32 to vector<8x1xi32>
    %31 = arith.cmpi sgt, %29, %30 : vector<8x1xi32>
    %c1_i32_12 = arith.constant 1 : i32
    %32 = tpu.dynamic_rotate %28 by %c1_i32_12 dim 0 : vector<8x16xf32>, i32 -> vector<8x16xf32>
    %cst_13 = arith.constant 0.000000e+00 : f32
    %33 = vector.shape_cast %31 : vector<8x1xi1> to vector<8x1xi1>
    %34 = vector.broadcast %33 : vector<8x1xi1> to vector<8x16xi1>
    %35 = vector.broadcast %cst_13 : f32 to vector<8x16xf32>
    %36 = arith.select %34, %32, %35 : vector<8x16xi1>, vector<8x16xf32>
    %c7_i32_14 = arith.constant 7 : i32
    %37 = vector.broadcast %c7_i32_14 : i32 to vector<8x1xi32>
    %38 = arith.cmpi slt, %29, %37 : vector<8x1xi32>
    %c7_i32_15 = arith.constant 7 : i32
    %39 = tpu.dynamic_rotate %28 by %c7_i32_15 dim 0 : vector<8x16xf32>, i32 -> vector<8x16xf32>
    %cst_16 = arith.constant 0.000000e+00 : f32
    %40 = vector.shape_cast %38 : vector<8x1xi1> to vector<8x1xi1>
    %41 = vector.broadcast %40 : vector<8x1xi1> to vector<8x16xi1>
    %42 = vector.broadcast %cst_16 : f32 to vector<8x16xf32>
    %43 = arith.select %41, %39, %42 : vector<8x16xi1>, vector<8x16xf32>
    %44 = tpu.concatenate %36, %28, %43 in 1 : vector<8x16xf32>, vector<8x16xf32>, vector<8x16xf32> -> vector<8x48xf32>
    %c0_17 = arith.constant 0 : index
    %c0_18 = arith.constant 0 : index
    %45 = vector.load %arg5[%c0_17, %c0_18] : memref<48x8xf32, #tpu.memory_space<vmem>>, vector<48x8xf32>
    %cst_19 = arith.constant dense<0.000000e+00> : vector<8x8xf32>
    %46 = tpu.matmul %44, %45, %cst_19 {dimension_numbers = #tpu.dot_dimension_numbers<[1], [0], [0], [1], [0, 0, 1, 1], [], []>} : vector<8x48xf32>, vector<48x8xf32>, vector<8x8xf32> -> vector<8x8xf32>
    %c0_20 = arith.constant 0 : index
    %c0_21 = arith.constant 0 : index
    %47 = vector.load %arg6[%c0_20, %c0_21] : memref<1x8xf32, #tpu.memory_space<vmem>>, vector<1x8xf32>
    %48 = vector.broadcast %47 : vector<1x8xf32> to vector<8x8xf32>
    %49 = arith.addf %46, %48 : vector<8x8xf32>
    %c1 = arith.constant 1 : index
    %50 = memref.load %arg1[%c1] : memref<3xf32, #tpu.memory_space<smem>>
    %cst_22 = arith.constant 0.000000e+00 : f32
    %51 = vector.broadcast %cst_22 : f32 to vector<8x8xf32>
    %52 = arith.cmpf oge, %49, %51 : vector<8x8xf32>
    %53 = vector.broadcast %50 : f32 to vector<8x8xf32>
    %54 = arith.mulf %53, %49 : vector<8x8xf32>
    %55 = arith.select %52, %49, %54 : vector<8x8xi1>, vector<8x8xf32>
    %56 = tpu.iota {dimensions = array<i32: 0>} : vector<8x1xi32>
    %c0_i32_23 = arith.constant 0 : i32
    %57 = vector.broadcast %c0_i32_23 : i32 to vector<8x1xi32>
    %58 = arith.cmpi sgt, %56, %57 : vector<8x1xi32>
    %c1_i32_24 = arith.constant 1 : i32
    %59 = tpu.dynamic_rotate %55 by %c1_i32_24 dim 0 : vector<8x8xf32>, i32 -> vector<8x8xf32>
    %cst_25 = arith.constant 0.000000e+00 : f32
    %60 = vector.shape_cast %58 : vector<8x1xi1> to vector<8x1xi1>
    %61 = vector.broadcast %60 : vector<8x1xi1> to vector<8x8xi1>
    %62 = vector.broadcast %cst_25 : f32 to vector<8x8xf32>
    %63 = arith.select %61, %59, %62 : vector<8x8xi1>, vector<8x8xf32>
    %c7_i32_26 = arith.constant 7 : i32
    %64 = vector.broadcast %c7_i32_26 : i32 to vector<8x1xi32>
    %65 = arith.cmpi slt, %56, %64 : vector<8x1xi32>
    %c7_i32_27 = arith.constant 7 : i32
    %66 = tpu.dynamic_rotate %55 by %c7_i32_27 dim 0 : vector<8x8xf32>, i32 -> vector<8x8xf32>
    %cst_28 = arith.constant 0.000000e+00 : f32
    %67 = vector.shape_cast %65 : vector<8x1xi1> to vector<8x1xi1>
    %68 = vector.broadcast %67 : vector<8x1xi1> to vector<8x8xi1>
    %69 = vector.broadcast %cst_28 : f32 to vector<8x8xf32>
    %70 = arith.select %68, %66, %69 : vector<8x8xi1>, vector<8x8xf32>
    %71 = tpu.concatenate %63, %55, %70 in 1 : vector<8x8xf32>, vector<8x8xf32>, vector<8x8xf32> -> vector<8x24xf32>
    %c0_29 = arith.constant 0 : index
    %c0_30 = arith.constant 0 : index
    %72 = vector.load %arg7[%c0_29, %c0_30] : memref<24x4xf32, #tpu.memory_space<vmem>>, vector<24x4xf32>
    %cst_31 = arith.constant dense<0.000000e+00> : vector<8x4xf32>
    %73 = tpu.matmul %71, %72, %cst_31 {dimension_numbers = #tpu.dot_dimension_numbers<[1], [0], [0], [1], [0, 0, 1, 1], [], []>} : vector<8x24xf32>, vector<24x4xf32>, vector<8x4xf32> -> vector<8x4xf32>
    %c0_32 = arith.constant 0 : index
    %c0_33 = arith.constant 0 : index
    %74 = vector.load %arg8[%c0_32, %c0_33] : memref<1x4xf32, #tpu.memory_space<vmem>>, vector<1x4xf32>
    %75 = vector.broadcast %74 : vector<1x4xf32> to vector<8x4xf32>
    %76 = arith.addf %73, %75 : vector<8x4xf32>
    %c2 = arith.constant 2 : index
    %77 = memref.load %arg1[%c2] : memref<3xf32, #tpu.memory_space<smem>>
    %cst_34 = arith.constant 0.000000e+00 : f32
    %78 = vector.broadcast %cst_34 : f32 to vector<8x4xf32>
    %79 = arith.cmpf oge, %76, %78 : vector<8x4xf32>
    %80 = vector.broadcast %77 : f32 to vector<8x4xf32>
    %81 = arith.mulf %80, %76 : vector<8x4xf32>
    %82 = arith.select %79, %76, %81 : vector<8x4xi1>, vector<8x4xf32>
    %83 = tpu.iota {dimensions = array<i32: 0>} : vector<8x1xi32>
    %c0_i32_35 = arith.constant 0 : i32
    %84 = vector.broadcast %c0_i32_35 : i32 to vector<8x1xi32>
    %85 = arith.cmpi sgt, %83, %84 : vector<8x1xi32>
    %c1_i32_36 = arith.constant 1 : i32
    %86 = tpu.dynamic_rotate %82 by %c1_i32_36 dim 0 : vector<8x4xf32>, i32 -> vector<8x4xf32>
    %cst_37 = arith.constant 0.000000e+00 : f32
    %87 = vector.shape_cast %85 : vector<8x1xi1> to vector<8x1xi1>
    %88 = vector.broadcast %87 : vector<8x1xi1> to vector<8x4xi1>
    %89 = vector.broadcast %cst_37 : f32 to vector<8x4xf32>
    %90 = arith.select %88, %86, %89 : vector<8x4xi1>, vector<8x4xf32>
    %c7_i32_38 = arith.constant 7 : i32
    %91 = vector.broadcast %c7_i32_38 : i32 to vector<8x1xi32>
    %92 = arith.cmpi slt, %83, %91 : vector<8x1xi32>
    %c7_i32_39 = arith.constant 7 : i32
    %93 = tpu.dynamic_rotate %82 by %c7_i32_39 dim 0 : vector<8x4xf32>, i32 -> vector<8x4xf32>
    %cst_40 = arith.constant 0.000000e+00 : f32
    %94 = vector.shape_cast %92 : vector<8x1xi1> to vector<8x1xi1>
    %95 = vector.broadcast %94 : vector<8x1xi1> to vector<8x4xi1>
    %96 = vector.broadcast %cst_40 : f32 to vector<8x4xf32>
    %97 = arith.select %95, %93, %96 : vector<8x4xi1>, vector<8x4xf32>
    %98 = tpu.concatenate %90, %82, %97 in 1 : vector<8x4xf32>, vector<8x4xf32>, vector<8x4xf32> -> vector<8x12xf32>
    %c0_41 = arith.constant 0 : index
    %c0_42 = arith.constant 0 : index
    %99 = vector.load %arg9[%c0_41, %c0_42] : memref<12x16xf32, #tpu.memory_space<vmem>>, vector<12x16xf32>
    %cst_43 = arith.constant dense<0.000000e+00> : vector<8x16xf32>
    %100 = tpu.matmul %98, %99, %cst_43 {dimension_numbers = #tpu.dot_dimension_numbers<[1], [0], [0], [1], [0, 0, 1, 1], [], []>} : vector<8x12xf32>, vector<12x16xf32>, vector<8x16xf32> -> vector<8x16xf32>
    %c0_44 = arith.constant 0 : index
    %c0_45 = arith.constant 0 : index
    %101 = vector.load %arg10[%c0_44, %c0_45] : memref<1x16xf32, #tpu.memory_space<vmem>>, vector<1x16xf32>
    %102 = vector.broadcast %101 : vector<1x16xf32> to vector<8x16xf32>
    %103 = arith.addf %100, %102 : vector<8x16xf32>
    %104 = tpu.transpose %103, [1, 0] : vector<8x16xf32> -> vector<16x8xf32>
    %c0_46 = arith.constant 0 : index
    %c0_47 = arith.constant 0 : index
    %c0_48 = arith.constant 0 : index
    %105 = vector.load %arg11[%c0_46, %c0_47, %c0_48] : memref<1x16x8xf32, #tpu.memory_space<vmem>>, vector<1x16x8xf32>
    %106 = vector.shape_cast %105 : vector<1x16x8xf32> to vector<16x8xf32>
    %107 = vector.shape_cast %104 : vector<16x8xf32> to vector<1x16x8xf32>
    tpu.vector_store %arg11[%c0_46, %c0_47, %c0_48], %107 {strides = array<i32>} : memref<1x16x8xf32, #tpu.memory_space<vmem>>, vector<1x16x8xf32>,
    return
  }
  func.func @transform_0(%arg0: i32) -> i32 {
    %c0_i32 = arith.constant 0 : i32
    %c0_i32_0 = arith.constant 0 : i32
    return %c0_i32 : i32
  }
  func.func @transform_1(%arg0: i32) -> (i32, i32, i32) {
    %c0_i32 = arith.constant 0 : i32
    %c0_i32_0 = arith.constant 0 : i32
    %c0_i32_1 = arith.constant 0 : i32
    return %arg0, %c0_i32, %c0_i32_0 : i32, i32, i32
  }
  func.func @transform_2(%arg0: i32) -> (i32, i32) {
    %c0_i32 = arith.constant 0 : i32
    %c0_i32_0 = arith.constant 0 : i32
    %c0_i32_1 = arith.constant 0 : i32
    return %c0_i32, %c0_i32_0 : i32, i32
  }
  func.func @transform_3(%arg0: i32) -> (i32, i32) {
    %c0_i32 = arith.constant 0 : i32
    %c0_i32_0 = arith.constant 0 : i32
    %c0_i32_1 = arith.constant 0 : i32
    return %c0_i32, %c0_i32_0 : i32, i32
  }
  func.func @transform_4(%arg0: i32) -> (i32, i32) {
    %c0_i32 = arith.constant 0 : i32
    %c0_i32_0 = arith.constant 0 : i32
    %c0_i32_1 = arith.constant 0 : i32
    return %c0_i32, %c0_i32_0 : i32, i32
  }
  func.func @transform_5(%arg0: i32) -> (i32, i32) {
    %c0_i32 = arith.constant 0 : i32
    %c0_i32_0 = arith.constant 0 : i32
    %c0_i32_1 = arith.constant 0 : i32
    return %c0_i32, %c0_i32_0 : i32, i32
  }
  func.func @transform_6(%arg0: i32) -> (i32, i32) {
    %c0_i32 = arith.constant 0 : i32
    %c0_i32_0 = arith.constant 0 : i32
    %c0_i32_1 = arith.constant 0 : i32
    return %c0_i32, %c0_i32_0 : i32, i32
  }
  func.func @transform_7(%arg0: i32) -> (i32, i32) {
    %c0_i32 = arith.constant 0 : i32
    %c0_i32_0 = arith.constant 0 : i32
    %c0_i32_1 = arith.constant 0 : i32
    return %c0_i32, %c0_i32_0 : i32, i32
  }
  func.func @transform_8(%arg0: i32) -> (i32, i32) {
    %c0_i32 = arith.constant 0 : i32
    %c0_i32_0 = arith.constant 0 : i32
    %c0_i32_1 = arith.constant 0 : i32
    return %c0_i32, %c0_i32_0 : i32, i32
  }
  func.func @transform_9(%arg0: i32) -> (i32, i32) {
    %c0_i32 = arith.constant 0 : i32
    %c0_i32_0 = arith.constant 0 : i32
    %c0_i32_1 = arith.constant 0 : i32
    return %c0_i32, %c0_i32_0 : i32, i32
  }
  func.func @transform_10(%arg0: i32) -> (i32, i32, i32) {
    %c0_i32 = arith.constant 0 : i32
    %c0_i32_0 = arith.constant 0 : i32
    %c0_i32_1 = arith.constant 0 : i32
    return %arg0, %c0_i32, %c0_i32_0 : i32, i32, i32
  }
}

</mosaic_0001>

<llo_original>
// kernel: encoder_cnn_forward.1
$region0: #{encoder_cnn_forward.1}
  #allocation0 [shape = 'u32[]', space=smem, size = 0x4, offset = 0x4, fixed_abs, tag = 'smem constant byte address 0x4 - core index']
  #allocation1 [shape = 'u32[144,128]{1,0:T(1,128)}', space=vmem, size = 0x12000, scoped, tag = 'internal scratch']
  %s0 = inlined_call_operand.vmem [shape: f32[3], index: 0, kind: input, shape index: {}]
  %s1 = inlined_call_operand.vmem [shape: f32[2,8,32], index: 1, kind: input, shape index: {}]
  %s2 = inlined_call_operand.vmem [shape: f32[96,16], index: 2, kind: input, shape index: {}]
  %s3 = inlined_call_operand.vmem [shape: f32[1,16], index: 3, kind: input, shape index: {}]
  %s4 = inlined_call_operand.vmem [shape: f32[48,8], index: 4, kind: input, shape index: {}]
  %s5 = inlined_call_operand.vmem [shape: f32[1,8], index: 5, kind: input, shape index: {}]
  %s6 = inlined_call_operand.vmem [shape: f32[24,4], index: 6, kind: input, shape index: {}]
  %s7 = inlined_call_operand.vmem [shape: f32[1,4], index: 7, kind: input, shape index: {}]
  %s8 = inlined_call_operand.vmem [shape: f32[12,16], index: 8, kind: input, shape index: {}]
  %s9 = inlined_call_operand.vmem [shape: f32[1,16], index: 9, kind: input, shape index: {}]
  %s10 = inlined_call_operand.vmem [shape: f32[2,16,8], index: 10, kind: output, shape index: {}]
  %s11 = sld [smem:[#allocation0]]
  $region77: #{encoder_cnn_forward.1} parent=0
    _
  %s13 = ssub.s32 1, %s11
  %s14 = scalar_select 0, %s13, %s11
  $region1: #{encoder_cnn_forward.1} parent=0
    #allocation2 [shape = 'u8[512]{0}', space=smem, size = 0x200, scoped, tag = 'input window, operand 0, single buffered']
    #allocation3 [shape = 's32[2]{0}', space=sflag, size = 0x8, scoped, tag = 'scoped memory for encoder_cnn_forward.1']
    %15 = vsyncpa [#allocation3], 0
    loop: start=0, step=1, limit=4
    $region2: #{encoder_cnn_forward.1} parent=1 // loop_pre_header
      _
    $region3: #{encoder_cnn_forward.1} parent=1 // loop_header
      %s17 = sphi 0, %s21
      %p18 = scmp.ge.s32.totalorder %s17, 4
      %s25 = sphi 0, %s25
      %s27 = sphi 0, %s25
      %s28 = sphi 0, %s27
      %s42 = sphi 0, %s28
      %s48 = sphi 0, %s50
      %s51 = sphi 0, %s48
      %s52 = sphi 0, %s51
      %s68 = sphi 0, %s52
      %s72 = sphi 0, %s72
      %s74 = sphi 0, %s72
      %s75 = sphi 0, %s74
      %s89 = sphi 0, %s75
      %s93 = sphi 0, %s93
      %s95 = sphi 0, %s93
      %s96 = sphi 0, %s95
      %s110 = sphi 0, %s96
      %s114 = sphi 0, %s114
      %s116 = sphi 0, %s114
      %s117 = sphi 0, %s116
      %s131 = sphi 0, %s117
      %s135 = sphi 0, %s135
      %s137 = sphi 0, %s135
      %s138 = sphi 0, %s137
      %s152 = sphi 0, %s138
      %s156 = sphi 0, %s156
      %s158 = sphi 0, %s156
      %s159 = sphi 0, %s158
      %s173 = sphi 0, %s159
      %s177 = sphi 0, %s177
      %s179 = sphi 0, %s177
      %s180 = sphi 0, %s179
      %s194 = sphi 0, %s180
      %s198 = sphi 0, %s198
      %s200 = sphi 0, %s198
      %s201 = sphi 0, %s200
      %s215 = sphi 0, %s201
      %s219 = sphi 0, %s219
      %s221 = sphi 0, %s219
      %s222 = sphi 0, %s221
      %s236 = sphi 0, %s222
      %s242 = sphi 0, %s244
      %s245 = sphi 0, %s242
      %s246 = sphi 0, %s245
      %s262 = sphi 0, %s246
    $region4: #{encoder_cnn_forward.1} parent=1 // loop_header_branch
      %20 = sbr.rel (%p18) target = $region8
    $region5: #{encoder_cnn_forward.1} parent=1 // loop_body
      %s22 = ssub.s32 %s17, 1
      %s23 = ssub.s32 %s17, 2
      %s24 = sadd.s32 %s17, 1
      %s26 = sadd.s32 %s25, 1
      %p29 = scmp.eq.s32.totalorder %s17, 1
      %p30 = scmp.ne.s32.totalorder %s25, %s27
      %p31 = scmp.eq.s32.totalorder %s17, 0
      %p32 = por %p30, %p31
      %p33 = scmp.ne.s32.totalorder %s25, %s27
      %p34 = scmp.eq.s32.totalorder %s22, 1
      %p35 = por %p33, %p34
      %p36 = scmp.ne.s32.totalorder %s27, %s28
      %p37 = scmp.eq.s32.totalorder %s22, 0
      %p38 = por %p36, %p37
      %p39 = scmp.ne.s32.totalorder %s27, %s28
      %p40 = scmp.eq.s32.totalorder %s23, 1
      %p41 = por %p39, %p40
      %p43 = scmp.ne.s32.totalorder %s28, %s42
      %p44 = scmp.eq.s32.totalorder %s23, 0
      %p45 = por %p43, %p44
      %s46 = ssub.s32 %s17, %s24
      %p47 = scmp.eq.s32.totalorder %s46, 0
      %s49 = sadd.s32 %s48, 1
      %s50 = scalar_select %p47, %s48, %s49
      %p53 = pneg %p47
      %p54 = scmp.eq.s32.totalorder %s17, 1
      %p55 = por %p53, %p54
      %p56 = scmp.ne.s32.totalorder %s48, %s51
      %p57 = scmp.eq.s32.totalorder %s17, 0
      %p58 = por %p56, %p57
      %p59 = scmp.ne.s32.totalorder %s48, %s51
      %p60 = scmp.eq.s32.totalorder %s22, 1
      %p61 = por %p59, %p60
      %p62 = scmp.ne.s32.totalorder %s51, %s52
      %p63 = scmp.eq.s32.totalorder %s22, 0
      %p64 = por %p62, %p63
      %p65 = scmp.ne.s32.totalorder %s51, %s52
      %p66 = scmp.eq.s32.totalorder %s23, 1
      %p67 = por %p65, %p66
      %p69 = scmp.ne.s32.totalorder %s52, %s68
      %p70 = scmp.eq.s32.totalorder %s23, 0
      %p71 = por %p69, %p70
      %s73 = sadd.s32 %s72, 1
      %p76 = scmp.eq.s32.totalorder %s17, 1
      %p77 = scmp.ne.s32.totalorder %s72, %s74
      %p78 = scmp.eq.s32.totalorder %s17, 0
      %p79 = por %p77, %p78
      %p80 = scmp.ne.s32.totalorder %s72, %s74
      %p81 = scmp.eq.s32.totalorder %s22, 1
      %p82 = por %p80, %p81
      %p83 = scmp.ne.s32.totalorder %s74, %s75
      %p84 = scmp.eq.s32.totalorder %s22, 0
      %p85 = por %p83, %p84
      %p86 = scmp.ne.s32.totalorder %s74, %s75
      %p87 = scmp.eq.s32.totalorder %s23, 1
      %p88 = por %p86, %p87
      %p90 = scmp.ne.s32.totalorder %s75, %s89
      %p91 = scmp.eq.s32.totalorder %s23, 0
      %p92 = por %p90, %p91
      %s94 = sadd.s32 %s93, 1
      %p97 = scmp.eq.s32.totalorder %s17, 1
      %p98 = scmp.ne.s32.totalorder %s93, %s95
      %p99 = scmp.eq.s32.totalorder %s17, 0
      %p100 = por %p98, %p99
      %p101 = scmp.ne.s32.totalorder %s93, %s95
      %p102 = scmp.eq.s32.totalorder %s22, 1
      %p103 = por %p101, %p102
      %p104 = scmp.ne.s32.totalorder %s95, %s96
      %p105 = scmp.eq.s32.totalorder %s22, 0
      %p106 = por %p104, %p105
      %p107 = scmp.ne.s32.totalorder %s95, %s96
      %p108 = scmp.eq.s32.totalorder %s23, 1
      %p109 = por %p107, %p108
      %p111 = scmp.ne.s32.totalorder %s96, %s110
      %p112 = scmp.eq.s32.totalorder %s23, 0
      %p113 = por %p111, %p112
      %s115 = sadd.s32 %s114, 1
      %p118 = scmp.eq.s32.totalorder %s17, 1
      %p119 = scmp.ne.s32.totalorder %s114, %s116
      %p120 = scmp.eq.s32.totalorder %s17, 0
      %p121 = por %p119, %p120
      %p122 = scmp.ne.s32.totalorder %s114, %s116
      %p123 = scmp.eq.s32.totalorder %s22, 1
      %p124 = por %p122, %p123
      %p125 = scmp.ne.s32.totalorder %s116, %s117
      %p126 = scmp.eq.s32.totalorder %s22, 0
      %p127 = por %p125, %p126
      %p128 = scmp.ne.s32.totalorder %s116, %s117
      %p129 = scmp.eq.s32.totalorder %s23, 1
      %p130 = por %p128, %p129
      %p132 = scmp.ne.s32.totalorder %s117, %s131
      %p133 = scmp.eq.s32.totalorder %s23, 0
      %p134 = por %p132, %p133
      %s136 = sadd.s32 %s135, 1
      %p139 = scmp.eq.s32.totalorder %s17, 1
      %p140 = scmp.ne.s32.totalorder %s135, %s137
      %p141 = scmp.eq.s32.totalorder %s17, 0
      %p142 = por %p140, %p141
      %p143 = scmp.ne.s32.totalorder %s135, %s137
      %p144 = scmp.eq.s32.totalorder %s22, 1
      %p145 = por %p143, %p144
      %p146 = scmp.ne.s32.totalorder %s137, %s138
      %p147 = scmp.eq.s32.totalorder %s22, 0
      %p148 = por %p146, %p147
      %p149 = scmp.ne.s32.totalorder %s137, %s138
      %p150 = scmp.eq.s32.totalorder %s23, 1
      %p151 = por %p149, %p150
      %p153 = scmp.ne.s32.totalorder %s138, %s152
      %p154 = scmp.eq.s32.totalorder %s23, 0
      %p155 = por %p153, %p154
      %s157 = sadd.s32 %s156, 1
      %p160 = scmp.eq.s32.totalorder %s17, 1
      %p161 = scmp.ne.s32.totalorder %s156, %s158
      %p162 = scmp.eq.s32.totalorder %s17, 0
      %p163 = por %p161, %p162
      %p164 = scmp.ne.s32.totalorder %s156, %s158
      %p165 = scmp.eq.s32.totalorder %s22, 1
      %p166 = por %p164, %p165
      %p167 = scmp.ne.s32.totalorder %s158, %s159
      %p168 = scmp.eq.s32.totalorder %s22, 0
      %p169 = por %p167, %p168
      %p170 = scmp.ne.s32.totalorder %s158, %s159
      %p171 = scmp.eq.s32.totalorder %s23, 1
      %p172 = por %p170, %p171
      %p174 = scmp.ne.s32.totalorder %s159, %s173
      %p175 = scmp.eq.s32.totalorder %s23, 0
      %p176 = por %p174, %p175
      %s178 = sadd.s32 %s177, 1
      %p181 = scmp.eq.s32.totalorder %s17, 1
      %p182 = scmp.ne.s32.totalorder %s177, %s179
      %p183 = scmp.eq.s32.totalorder %s17, 0
      %p184 = por %p182, %p183
      %p185 = scmp.ne.s32.totalorder %s177, %s179
      %p186 = scmp.eq.s32.totalorder %s22, 1
      %p187 = por %p185, %p186
      %p188 = scmp.ne.s32.totalorder %s179, %s180
      %p189 = scmp.eq.s32.totalorder %s22, 0
      %p190 = por %p188, %p189
      %p191 = scmp.ne.s32.totalorder %s179, %s180
      %p192 = scmp.eq.s32.totalorder %s23, 1
      %p193 = por %p191, %p192
      %p195 = scmp.ne.s32.totalorder %s180, %s194
      %p196 = scmp.eq.s32.totalorder %s23, 0
      %p197 = por %p195, %p196
      %s199 = sadd.s32 %s198, 1
      %p202 = scmp.eq.s32.totalorder %s17, 1
      %p203 = scmp.ne.s32.totalorder %s198, %s200
      %p204 = scmp.eq.s32.totalorder %s17, 0
      %p205 = por %p203, %p204
      %p206 = scmp.ne.s32.totalorder %s198, %s200
      %p207 = scmp.eq.s32.totalorder %s22, 1
      %p208 = por %p206, %p207
      %p209 = scmp.ne.s32.totalorder %s200, %s201
      %p210 = scmp.eq.s32.totalorder %s22, 0
      %p211 = por %p209, %p210
      %p212 = scmp.ne.s32.totalorder %s200, %s201
      %p213 = scmp.eq.s32.totalorder %s23, 1
      %p214 = por %p212, %p213
      %p216 = scmp.ne.s32.totalorder %s201, %s215
      %p217 = scmp.eq.s32.totalorder %s23, 0
      %p218 = por %p216, %p217
      %s220 = sadd.s32 %s219, 1
      %p223 = scmp.eq.s32.totalorder %s17, 1
      %p224 = scmp.ne.s32.totalorder %s219, %s221
      %p225 = scmp.eq.s32.totalorder %s17, 0
      %p226 = por %p224, %p225
      %p227 = scmp.ne.s32.totalorder %s219, %s221
      %p228 = scmp.eq.s32.totalorder %s22, 1
      %p229 = por %p227, %p228
      %p230 = scmp.ne.s32.totalorder %s221, %s222
      %p231 = scmp.eq.s32.totalorder %s22, 0
      %p232 = por %p230, %p231
      %p233 = scmp.ne.s32.totalorder %s221, %s222
      %p234 = scmp.eq.s32.totalorder %s23, 1
      %p235 = por %p233, %p234
      %p237 = scmp.ne.s32.totalorder %s222, %s236
      %p238 = scmp.eq.s32.totalorder %s23, 0
      %p239 = por %p237, %p238
      %s240 = ssub.s32 %s17, %s24
      %p241 = scmp.eq.s32.totalorder %s240, 0
      %s243 = sadd.s32 %s242, 1
      %s244 = scalar_select %p241, %s242, %s243
      %p247 = pneg %p241
      %p248 = scmp.eq.s32.totalorder %s17, 1
      %p249 = por %p247, %p248
      %p250 = scmp.ne.s32.totalorder %s242, %s245
      %p251 = scmp.eq.s32.totalorder %s17, 0
      %p252 = por %p250, %p251
      %p253 = scmp.ne.s32.totalorder %s242, %s245
      %p254 = scmp.eq.s32.totalorder %s22, 1
      %p255 = por %p253, %p254
      %p256 = scmp.ne.s32.totalorder %s245, %s246
      %p257 = scmp.eq.s32.totalorder %s22, 0
      %p258 = por %p256, %p257
      %p259 = scmp.ne.s32.totalorder %s245, %s246
      %p260 = scmp.eq.s32.totalorder %s23, 1
      %p261 = por %p259, %p260
      %p263 = scmp.ne.s32.totalorder %s246, %s262
      %p264 = scmp.eq.s32.totalorder %s23, 0
      %p265 = por %p263, %p264
      %p266 = scmp.le.s32.totalorder 1, %s17
      %p267 = scmp.lt.s32.totalorder %s17, 3
      %p268 = pnand %p266, %p267
      %p269 = pneg %p268
      // Predicated region
      $region9: #{encoder_cnn_forward.1} parent=5 // pred_check
        _
      $region10: #{encoder_cnn_forward.1} parent=5 // pred_check_branch
        %271 = sbr.rel (%p268) target = $region12
      $region11: #{encoder_cnn_forward.1} parent=5 // pred_region
        %s272 = ssub.s32 %s17, 1
        // Predicated region
        $region13: #{encoder_cnn_forward.1} parent=11 // pred_check
          %p273 = pneg %p38
        $region14: #{encoder_cnn_forward.1} parent=11 // pred_check_branch
          %275 = sbr.rel (%p273) target = $region16
        $region15: #{encoder_cnn_forward.1} parent=11 // pred_region
          %s277 = ssub.s32 16, 16
          %278 = vsyncadd [#allocation3], %s277
          %s280 = sshll.u32 %s0, 4
          %s281 = int_to_ptr.vmem [resolvable:$true] %s280
          %283 = dma.vmem_to_smem %s281, 16, [#allocation2], [#allocation3]
        $region16: #{encoder_cnn_forward.1} parent=11 // pred_fallthru
          _
        // Predicated region
        $region17: #{encoder_cnn_forward.1} parent=11 // pred_check
          %p284 = pneg %p85
        $region18: #{encoder_cnn_forward.1} parent=11 // pred_check_branch
          %286 = sbr.rel (%p284) target = $region20
        $region19: #{encoder_cnn_forward.1} parent=11 // pred_region
          _
        $region20: #{encoder_cnn_forward.1} parent=11 // pred_fallthru
          _
        // Predicated region
        $region21: #{encoder_cnn_forward.1} parent=11 // pred_check
          %p287 = pneg %p106
        $region22: #{encoder_cnn_forward.1} parent=11 // pred_check_branch
          %289 = sbr.rel (%p287) target = $region24
        $region23: #{encoder_cnn_forward.1} parent=11 // pred_region
          _
        $region24: #{encoder_cnn_forward.1} parent=11 // pred_fallthru
          _
        // Predicated region
        $region25: #{encoder_cnn_forward.1} parent=11 // pred_check
          %p290 = pneg %p127
        $region26: #{encoder_cnn_forward.1} parent=11 // pred_check_branch
          %292 = sbr.rel (%p290) target = $region28
        $region27: #{encoder_cnn_forward.1} parent=11 // pred_region
          _
        $region28: #{encoder_cnn_forward.1} parent=11 // pred_fallthru
          _
        // Predicated region
        $region29: #{encoder_cnn_forward.1} parent=11 // pred_check
          %p293 = pneg %p148
        $region30: #{encoder_cnn_forward.1} parent=11 // pred_check_branch
          %295 = sbr.rel (%p293) target = $region32
        $region31: #{encoder_cnn_forward.1} parent=11 // pred_region
          _
        $region32: #{encoder_cnn_forward.1} parent=11 // pred_fallthru
          _
        // Predicated region
        $region33: #{encoder_cnn_forward.1} parent=11 // pred_check
          %p296 = pneg %p169
        $region34: #{encoder_cnn_forward.1} parent=11 // pred_check_branch
          %298 = sbr.rel (%p296) target = $region36
        $region35: #{encoder_cnn_forward.1} parent=11 // pred_region
          _
        $region36: #{encoder_cnn_forward.1} parent=11 // pred_fallthru
          _
        // Predicated region
        $region37: #{encoder_cnn_forward.1} parent=11 // pred_check
          %p299 = pneg %p190
        $region38: #{encoder_cnn_forward.1} parent=11 // pred_check_branch
          %301 = sbr.rel (%p299) target = $region40
        $region39: #{encoder_cnn_forward.1} parent=11 // pred_region
          _
        $region40: #{encoder_cnn_forward.1} parent=11 // pred_fallthru
          _
        // Predicated region
        $region41: #{encoder_cnn_forward.1} parent=11 // pred_check
          %p302 = pneg %p211
        $region42: #{encoder_cnn_forward.1} parent=11 // pred_check_branch
          %304 = sbr.rel (%p302) target = $region44
        $region43: #{encoder_cnn_forward.1} parent=11 // pred_region
          _
        $region44: #{encoder_cnn_forward.1} parent=11 // pred_fallthru
          _
        // Predicated region
        $region45: #{encoder_cnn_forward.1} parent=11 // pred_check
          %p305 = pneg %p232
        $region46: #{encoder_cnn_forward.1} parent=11 // pred_check_branch
          %307 = sbr.rel (%p305) target = $region48
        $region47: #{encoder_cnn_forward.1} parent=11 // pred_region
          _
        $region48: #{encoder_cnn_forward.1} parent=11 // pred_fallthru
          _
      $region12: #{encoder_cnn_forward.1} parent=5 // pred_fallthru
        _
      %p308 = scmp.lt.s32.totalorder %s17, 2
      // Predicated region
      $region49: #{encoder_cnn_forward.1} parent=5 // pred_check
        %p309 = pneg %p308
      $region50: #{encoder_cnn_forward.1} parent=5 // pred_check_branch
        %311 = sbr.rel (%p309) target = $region52
      $region51: #{encoder_cnn_forward.1} parent=5 // pred_region
        // Predicated region
        $region53: #{encoder_cnn_forward.1} parent=51 // pred_check
          %p312 = pneg %p58
        $region54: #{encoder_cnn_forward.1} parent=51 // pred_check_branch
          %314 = sbr.rel (%p312) target = $region56
        $region55: #{encoder_cnn_forward.1} parent=51 // pred_region
          %p315 = scmp.lt.s32.totalorder %s17, 1
          %s316 = scalar_select %p315, %s17, 1
          %s317 = smul.addr %s316, 8
          %s318 = scalar_lea.vmem %s1, %s317
        $region56: #{encoder_cnn_forward.1} parent=51 // pred_fallthru
          _
      $region52: #{encoder_cnn_forward.1} parent=5 // pred_fallthru
        _
      %p319 = scmp.le.s32.totalorder 1, %s17
      %p320 = scmp.lt.s32.totalorder %s17, 3
      %p321 = pnand %p319, %p320
      %p322 = pneg %p321
      // Predicated region
      $region57: #{encoder_cnn_forward.1} parent=5 // pred_check
        _
      $region58: #{encoder_cnn_forward.1} parent=5 // pred_check_branch
        %324 = sbr.rel (%p321) target = $region60
      $region59: #{encoder_cnn_forward.1} parent=5 // pred_region
        %s325 = ssub.s32 %s17, 1
        // Predicated region
        $region61: #{encoder_cnn_forward.1} parent=59 // pred_check
          %p326 = pneg %p38
        $region62: #{encoder_cnn_forward.1} parent=59 // pred_check_branch
          %328 = sbr.rel (%p326) target = $region64
        $region63: #{encoder_cnn_forward.1} parent=59 // pred_region
          %329 = dma.done [#allocation3], 16
        $region64: #{encoder_cnn_forward.1} parent=59 // pred_fallthru
          _
        %330 = sfence
        %p331 = pneg %p38
        %p332 = pneg %p35
        %p333 = scmp.lt.s32.totalorder %s22, 1
        %s334 = scalar_select %p333, %s22, 1
        %s335 = smul.addr %s334, 8
        %s336 = scalar_lea.vmem %s1, %s335
        %p337 = pneg %p64
        %p338 = pneg %p61
        %p339 = pneg %p85
        %p340 = pneg %p82
        %p341 = pneg %p106
        %p342 = pneg %p103
        %p343 = pneg %p127
        %p344 = pneg %p124
        %p345 = pneg %p148
        %p346 = pneg %p145
        %p347 = pneg %p169
        %p348 = pneg %p166
        %p349 = pneg %p190
        %p350 = pneg %p187
        %p351 = pneg %p211
        %p352 = pneg %p208
        %p353 = pneg %p232
        %p354 = pneg %p229
        %p355 = pneg %p258
        %p356 = pneg %p255
        %p357 = scmp.lt.s32.totalorder %s22, 1
        %s358 = scalar_select %p357, %s22, 1
        %s359 = smul.addr %s358, 2
        %s360 = smul.addr %s359, 8
        %s361 = scalar_lea.vmem %s10, %s360
        %p362 = scmp.lt.s32.totalorder %s22, 1
        %s363 = scalar_select %p362, %s22, 1
        %s364 = smul.addr %s363, 8
        %s365 = scalar_lea.vmem %s1, %s364
        %p366 = scmp.lt.s32.totalorder %s22, 1
        %s367 = scalar_select %p366, %s22, 1
        %s368 = smul.addr %s367, 2
        %s369 = smul.addr %s368, 8
        %s370 = scalar_lea.vmem %s10, %s369
        %v371 = vld [vmem:[%s365] sm:$0xff]
        %v372 = vlaneseq
        %v373 = vshrl.u32 %v372, 7
        %vm374 = vcmp.gt.s32.totalorder %v373, 0
        %v375 = vrot.slane %v371, 7
        %v376 = vsel %vm374, 1, 0
        %vm377 = vcmp.eq.s32.totalorder %v376, 1
        %v378 = vsel %vm377, %v375, 0.0
        %vm379 = vcmp.lt.s32.totalorder %v373, 7
        %v380 = vrot.slane %v371, 1
        %v381 = vsel %vm379, 1, 0
        %vm382 = vcmp.eq.s32.totalorder %v381, 1
        %v383 = vsel %vm382, %v380, 0.0
        %385 = vrot.lane.b32.xlu0 %v371, 32
        %v386 = vpop.permute.xlu0 %385
        %389 = vrot.lane.b32.xlu0 %v383, 64
        %v390 = vpop.permute.xlu0 %389
        %vm392 = vcmask 261120
        %v393 = vsel %vm392, %v378, %v386
        %vm394 = vcmask 523264
        %v395 = vsel %vm394, %v393, %v390
        %v396 = vld [vmem:[%s2] sm:$0xff]
        %v397 = vld [vmem:[%s2 + $0x8] sm:$0xff]
        %v398 = vld [vmem:[%s2 + $0x10] sm:$0xff]
        %v399 = vld [vmem:[%s2 + $0x18] sm:$0xff]
        %v400 = vld [vmem:[%s2 + $0x20] sm:$0xff]
        %v401 = vld [vmem:[%s2 + $0x28] sm:$0xff]
        %v402 = vld [vmem:[%s2 + $0x30] sm:$0xff]
        %v403 = vld [vmem:[%s2 + $0x38] sm:$0xff]
        %v404 = vld [vmem:[%s2 + $0x40] sm:$0xff]
        %v405 = vld [vmem:[%s2 + $0x48] sm:$0xff]
        %v406 = vld [vmem:[%s2 + $0x50] sm:$0xff]
        %v407 = vld [vmem:[%s2 + $0x58] sm:$0xff]
        %v408 = vld [vmem:[%s3] sm:$0x1]
        %v410 = vlaneseq
        %v411 = vshrl.u32 %v410, 7
        %v412 = vsub.s32 0, %v411
        %v413 = vrot.slane %v408, %v412
        %vm415 = vcmask 785408
        %v417 = vsel %vm415, %v395, 0
        %419 = vmatprep.subr.mxu0 0.0
        %420 = vmatpush1.msra.mxu0 0.0
        %421 = vmatprep.subr.mxu0 0.0
        %422 = vmatpush1.msra.mxu0 0.0
        %423 = vmatprep.subr.mxu0 0.0
        %424 = vmatpush1.msra.mxu0 0.0
        %425 = vmatprep.subr.mxu0 0.0
        %426 = vmatpush1.msra.mxu0 0.0
        %427 = vmatprep.subr.mxu0 0.0
        %428 = vmatpush1.msra.mxu0 %v407
        %429 = vmatprep.subr.mxu0 0.0
        %430 = vmatpush1.msra.mxu0 %v406
        %431 = vmatprep.subr.mxu0 0.0
        %432 = vmatpush1.msra.mxu0 %v405
        %433 = vmatprep.subr.mxu0 0.0
        %434 = vmatpush1.msra.mxu0 %v404
        %435 = vmatprep.subr.mxu0 0.0
        %436 = vmatpush1.msra.mxu0 %v403
        %437 = vmatprep.subr.mxu0 0.0
        %438 = vmatpush1.msra.mxu0 %v402
        %439 = vmatprep.subr.mxu0 0.0
        %440 = vmatpush1.msra.mxu0 %v401
        %441 = vmatprep.subr.mxu0 0.0
        %442 = vmatpush1.msra.mxu0 %v400
        %443 = vmatprep.subr.mxu0 0.0
        %444 = vmatpush1.msra.mxu0 %v399
        %445 = vmatprep.subr.mxu0 0.0
        %446 = vmatpush1.msra.mxu0 %v398
        %447 = vmatprep.subr.mxu0 0.0
        %448 = vmatpush1.msra.mxu0 %v397
        %449 = vmatprep.subr.mxu0 0.0
        %450 = vmatpush1.msra.mxu0 %v396
        %451 = vmatprep.subr.mxu0 0.0
        %452 = vmatpush2.msra.mxu0 0.0
        %453 = vmatprep.subr.mxu0 0.0
        %454 = vmatpush2.msra.mxu0 0.0
        %455 = vmatprep.subr.mxu0 0.0
        %456 = vmatpush2.msra.mxu0 0.0
        %457 = vmatprep.subr.mxu0 0.0
        %458 = vmatpush2.msra.mxu0 0.0
        %459 = vmatprep.subr.mxu0 0.0
        %460 = vmatpush2.msra.mxu0 0.0
        %461 = vmatprep.subr.mxu0 0.0
        %462 = vmatpush2.msra.mxu0 0.0
        %463 = vmatprep.subr.mxu0 0.0
        %464 = vmatpush2.msra.mxu0 0.0
        %465 = vmatprep.subr.mxu0 0.0
        %466 = vmatpush2.msra.mxu0 0.0
        %467 = vmatprep.subr.mxu0 0.0
        %468 = vmatpush2.msra.mxu0 0.0
        %469 = vmatprep.subr.mxu0 0.0
        %470 = vmatpush2.msra.mxu0 0.0
        %471 = vmatprep.subr.mxu0 0.0
        %472 = vmatpush2.msra.mxu0 0.0
        %473 = vmatprep.subr.mxu0 0.0
        %474 = vmatpush2.msra.mxu0 0.0
        %475 = vmatprep.subr.mxu0 0.0
        %476 = vmatpush2.msra.mxu0 0.0
        %477 = vmatprep.subr.mxu0 0.0
        %478 = vmatpush2.msra.mxu0 0.0
        %479 = vmatprep.subr.mxu0 0.0
        %480 = vmatpush2.msra.mxu0 0.0
        %481 = vmatprep.subr.mxu0 0.0
        %482 = vmatpush2.msra.mxu0 0.0
        %483 = vmatprep.mubr.f32.mxu0 0.0
        %484 = vmatmul.mubr.f32.gmra.mxu0 %v417
        %v485 = vpop.f32.mrf.mxu0
        %v486 = vadd.f32 %v413, %v485
        %v487 = vpop.f32.mrf.mxu0
        %488 = vdwg.mxu0
        %s489 = sld [smem:[#allocation2]]
        %vm490 = vcmp.ge.f32.partialorder %v486, 0.0
        %v491 = vstv %s489
        %v492 = vmul.f32 %v491, %v486
        %v493 = vsel %vm490, %v486, %v492
        %v494 = vrot.slane %v493, 7
        %v495 = vsel %vm377, %v494, 0.0
        %v496 = vrot.slane %v493, 1
        %v497 = vsel %vm382, %v496, 0.0
        %499 = vrot.lane.b32.xlu0 %v493, 16
        %v500 = vpop.permute.xlu0 %499
        %503 = vrot.lane.b32.xlu0 %v497, 32
        %v504 = vpop.permute.xlu0 %503
        %vm506 = vcmask 130048
        %v507 = vsel %vm506, %v495, %v500
        %v508 = vsel %vm392, %v507, %v504
        %v509 = vld [vmem:[%s4] sm:$0xff]
        %v510 = vld [vmem:[%s4 + $0x8] sm:$0xff]
        %v511 = vld [vmem:[%s4 + $0x10] sm:$0xff]
        %v512 = vld [vmem:[%s4 + $0x18] sm:$0xff]
        %v513 = vld [vmem:[%s4 + $0x20] sm:$0xff]
        %v514 = vld [vmem:[%s4 + $0x28] sm:$0xff]
        %v515 = vld [vmem:[%s5] sm:$0x1]
        %v517 = vlaneseq
        %v518 = vshrl.u32 %v517, 7
        %v519 = vsub.s32 0, %v518
        %v520 = vrot.slane %v515, %v519
        %vm522 = vcmask 392192
        %v524 = vsel %vm522, %v508, 0
        %526 = vmatprep.subr.mxu0 0.0
        %527 = vmatpush1.msra.mxu0 0.0
        %528 = vmatprep.subr.mxu0 0.0
        %529 = vmatpush1.msra.mxu0 0.0
        %530 = vmatprep.subr.mxu0 0.0
        %531 = vmatpush1.msra.mxu0 0.0
        %532 = vmatprep.subr.mxu0 0.0
        %533 = vmatpush1.msra.mxu0 0.0
        %534 = vmatprep.subr.mxu0 0.0
        %535 = vmatpush1.msra.mxu0 0.0
        %536 = vmatprep.subr.mxu0 0.0
        %537 = vmatpush1.msra.mxu0 0.0
        %538 = vmatprep.subr.mxu0 0.0
        %539 = vmatpush1.msra.mxu0 0.0
        %540 = vmatprep.subr.mxu0 0.0
        %541 = vmatpush1.msra.mxu0 0.0
        %542 = vmatprep.subr.mxu0 0.0
        %543 = vmatpush1.msra.mxu0 0.0
        %544 = vmatprep.subr.mxu0 0.0
        %545 = vmatpush1.msra.mxu0 0.0
        %546 = vmatprep.subr.mxu0 0.0
        %547 = vmatpush1.msra.mxu0 %v514
        %548 = vmatprep.subr.mxu0 0.0
        %549 = vmatpush1.msra.mxu0 %v513
        %550 = vmatprep.subr.mxu0 0.0
        %551 = vmatpush1.msra.mxu0 %v512
        %552 = vmatprep.subr.mxu0 0.0
        %553 = vmatpush1.msra.mxu0 %v511
        %554 = vmatprep.subr.mxu0 0.0
        %555 = vmatpush1.msra.mxu0 %v510
        %556 = vmatprep.subr.mxu0 0.0
        %557 = vmatpush1.msra.mxu0 %v509
        %558 = vmatprep.subr.mxu0 0.0
        %559 = vmatpush2.msra.mxu0 0.0
        %560 = vmatprep.subr.mxu0 0.0
        %561 = vmatpush2.msra.mxu0 0.0
        %562 = vmatprep.subr.mxu0 0.0
        %563 = vmatpush2.msra.mxu0 0.0
        %564 = vmatprep.subr.mxu0 0.0
        %565 = vmatpush2.msra.mxu0 0.0
        %566 = vmatprep.subr.mxu0 0.0
        %567 = vmatpush2.msra.mxu0 0.0
        %568 = vmatprep.subr.mxu0 0.0
        %569 = vmatpush2.msra.mxu0 0.0
        %570 = vmatprep.subr.mxu0 0.0
        %571 = vmatpush2.msra.mxu0 0.0
        %572 = vmatprep.subr.mxu0 0.0
        %573 = vmatpush2.msra.mxu0 0.0
        %574 = vmatprep.subr.mxu0 0.0
        %575 = vmatpush2.msra.mxu0 0.0
        %576 = vmatprep.subr.mxu0 0.0
        %577 = vmatpush2.msra.mxu0 0.0
        %578 = vmatprep.subr.mxu0 0.0
        %579 = vmatpush2.msra.mxu0 0.0
        %580 = vmatprep.subr.mxu0 0.0
        %581 = vmatpush2.msra.mxu0 0.0
        %582 = vmatprep.subr.mxu0 0.0
        %583 = vmatpush2.msra.mxu0 0.0
        %584 = vmatprep.subr.mxu0 0.0
        %585 = vmatpush2.msra.mxu0 0.0
        %586 = vmatprep.subr.mxu0 0.0
        %587 = vmatpush2.msra.mxu0 0.0
        %588 = vmatprep.subr.mxu0 0.0
        %589 = vmatpush2.msra.mxu0 0.0
        %590 = vmatprep.mubr.f32.mxu0 0.0
        %591 = vmatmul.mubr.f32.gmra.mxu0 %v524
        %v592 = vpop.f32.mrf.mxu0
        %v593 = vadd.f32 %v520, %v592
        %v594 = vpop.f32.mrf.mxu0
        %595 = vdwg.mxu0
        %s596 = sld [smem:[#allocation2 + $0x1]]
        %vm597 = vcmp.ge.f32.partialorder %v593, 0.0
        %v598 = vstv %s596
        %v599 = vmul.f32 %v598, %v593
        %v600 = vsel %vm597, %v593, %v599
        %v601 = vrot.slane %v600, 7
        %v602 = vsel %vm377, %v601, 0.0
        %v603 = vrot.slane %v600, 1
        %v604 = vsel %vm382, %v603, 0.0
        %606 = vrot.lane.b32.xlu0 %v600, 8
        %v607 = vpop.permute.xlu0 %606
        %610 = vrot.lane.b32.xlu0 %v604, 16
        %v611 = vpop.permute.xlu0 %610
        %vm613 = vcmask 64512
        %v614 = vsel %vm613, %v602, %v607
        %v615 = vsel %vm506, %v614, %v611
        %v616 = vld [vmem:[%s6] sm:$0xff]
        %v617 = vld [vmem:[%s6 + $0x8] sm:$0xff]
        %v618 = vld [vmem:[%s6 + $0x10] sm:$0xff]
        %v619 = vld [vmem:[%s7] sm:$0x1]
        %v621 = vlaneseq
        %v622 = vshrl.u32 %v621, 7
        %v623 = vsub.s32 0, %v622
        %v624 = vrot.slane %v619, %v623
        %vm626 = vcmask 195584
        %v628 = vsel %vm626, %v615, 0
        %630 = vmatprep.subr.mxu0 0.0
        %631 = vmatpush1.msra.mxu0 0.0
        %632 = vmatprep.subr.mxu0 0.0
        %633 = vmatpush1.msra.mxu0 0.0
        %634 = vmatprep.subr.mxu0 0.0
        %635 = vmatpush1.msra.mxu0 0.0
        %636 = vmatprep.subr.mxu0 0.0
        %637 = vmatpush1.msra.mxu0 0.0
        %638 = vmatprep.subr.mxu0 0.0
        %639 = vmatpush1.msra.mxu0 0.0
        %640 = vmatprep.subr.mxu0 0.0
        %641 = vmatpush1.msra.mxu0 0.0
        %642 = vmatprep.subr.mxu0 0.0
        %643 = vmatpush1.msra.mxu0 0.0
        %644 = vmatprep.subr.mxu0 0.0
        %645 = vmatpush1.msra.mxu0 0.0
        %646 = vmatprep.subr.mxu0 0.0
        %647 = vmatpush1.msra.mxu0 0.0
        %648 = vmatprep.subr.mxu0 0.0
        %649 = vmatpush1.msra.mxu0 0.0
        %650 = vmatprep.subr.mxu0 0.0
        %651 = vmatpush1.msra.mxu0 0.0
        %652 = vmatprep.subr.mxu0 0.0
        %653 = vmatpush1.msra.mxu0 0.0
        %654 = vmatprep.subr.mxu0 0.0
        %655 = vmatpush1.msra.mxu0 0.0
        %656 = vmatprep.subr.mxu0 0.0
        %657 = vmatpush1.msra.mxu0 %v618
        %658 = vmatprep.subr.mxu0 0.0
        %659 = vmatpush1.msra.mxu0 %v617
        %660 = vmatprep.subr.mxu0 0.0
        %661 = vmatpush1.msra.mxu0 %v616
        %662 = vmatprep.subr.mxu0 0.0
        %663 = vmatpush2.msra.mxu0 0.0
        %664 = vmatprep.subr.mxu0 0.0
        %665 = vmatpush2.msra.mxu0 0.0
        %666 = vmatprep.subr.mxu0 0.0
        %667 = vmatpush2.msra.mxu0 0.0
        %668 = vmatprep.subr.mxu0 0.0
        %669 = vmatpush2.msra.mxu0 0.0
        %670 = vmatprep.subr.mxu0 0.0
        %671 = vmatpush2.msra.mxu0 0.0
        %672 = vmatprep.subr.mxu0 0.0
        %673 = vmatpush2.msra.mxu0 0.0
        %674 = vmatprep.subr.mxu0 0.0
        %675 = vmatpush2.msra.mxu0 0.0
        %676 = vmatprep.subr.mxu0 0.0
        %677 = vmatpush2.msra.mxu0 0.0
        %678 = vmatprep.subr.mxu0 0.0
        %679 = vmatpush2.msra.mxu0 0.0
        %680 = vmatprep.subr.mxu0 0.0
        %681 = vmatpush2.msra.mxu0 0.0
        %682 = vmatprep.subr.mxu0 0.0
        %683 = vmatpush2.msra.mxu0 0.0
        %684 = vmatprep.subr.mxu0 0.0
        %685 = vmatpush2.msra.mxu0 0.0
        %686 = vmatprep.subr.mxu0 0.0
        %687 = vmatpush2.msra.mxu0 0.0
        %688 = vmatprep.subr.mxu0 0.0
        %689 = vmatpush2.msra.mxu0 0.0
        %690 = vmatprep.subr.mxu0 0.0
        %691 = vmatpush2.msra.mxu0 0.0
        %692 = vmatprep.subr.mxu0 0.0
        %693 = vmatpush2.msra.mxu0 0.0
        %694 = vmatprep.mubr.f32.mxu0 0.0
        %695 = vmatmul.mubr.f32.gmra.mxu0 %v628
        %v696 = vpop.f32.mrf.mxu0
        %v697 = vadd.f32 %v624, %v696
        %v698 = vpop.f32.mrf.mxu0
        %699 = vdwg.mxu0
        %s700 = sld [smem:[#allocation2 + $0x2]]
        %vm701 = vcmp.ge.f32.partialorder %v697, 0.0
        %v702 = vstv %s700
        %v703 = vmul.f32 %v702, %v697
        %v704 = vsel %vm701, %v697, %v703
        %v705 = vrot.slane %v704, 7
        %v706 = vsel %vm377, %v705, 0.0
        %v707 = vrot.slane %v704, 1
        %v708 = vsel %vm382, %v707, 0.0
        %710 = vrot.lane.b32.xlu0 %v704, 4
        %v711 = vpop.permute.xlu0 %710
        %714 = vrot.lane.b32.xlu0 %v708, 8
        %v715 = vpop.permute.xlu0 %714
        %vm717 = vcmask 31744
        %v718 = vsel %vm717, %v706, %v711
        %v719 = vsel %vm613, %v718, %v715
        %v720 = vld [vmem:[%s8] sm:$0xff]
        %v721 = vld [vmem:[%s8 + $0x8] sm:$0xf]
        %v722 = vld [vmem:[%s9] sm:$0x1]
        %v724 = vlaneseq
        %v725 = vshrl.u32 %v724, 7
        %v726 = vsub.s32 0, %v725
        %v727 = vrot.slane %v722, %v726
        %vm729 = vcmask 97280
        %v731 = vsel %vm729, %v719, 0
        %vm733 = vcmask 1043456
        %v735 = vsel %vm733, %v721, 0
        %737 = vmatprep.subr.mxu0 0.0
        %738 = vmatpush1.msra.mxu0 0.0
        %739 = vmatprep.subr.mxu0 0.0
        %740 = vmatpush1.msra.mxu0 0.0
        %741 = vmatprep.subr.mxu0 0.0
        %742 = vmatpush1.msra.mxu0 0.0
        %743 = vmatprep.subr.mxu0 0.0
        %744 = vmatpush1.msra.mxu0 0.0
        %745 = vmatprep.subr.mxu0 0.0
        %746 = vmatpush1.msra.mxu0 0.0
        %747 = vmatprep.subr.mxu0 0.0
        %748 = vmatpush1.msra.mxu0 0.0
        %749 = vmatprep.subr.mxu0 0.0
        %750 = vmatpush1.msra.mxu0 0.0
        %751 = vmatprep.subr.mxu0 0.0
        %752 = vmatpush1.msra.mxu0 0.0
        %753 = vmatprep.subr.mxu0 0.0
        %754 = vmatpush1.msra.mxu0 0.0
        %755 = vmatprep.subr.mxu0 0.0
        %756 = vmatpush1.msra.mxu0 0.0
        %757 = vmatprep.subr.mxu0 0.0
        %758 = vmatpush1.msra.mxu0 0.0
        %759 = vmatprep.subr.mxu0 0.0
        %760 = vmatpush1.msra.mxu0 0.0
        %761 = vmatprep.subr.mxu0 0.0
        %762 = vmatpush1.msra.mxu0 0.0
        %763 = vmatprep.subr.mxu0 0.0
        %764 = vmatpush1.msra.mxu0 0.0
        %765 = vmatprep.subr.mxu0 0.0
        %766 = vmatpush1.msra.mxu0 %v735
        %767 = vmatprep.subr.mxu0 0.0
        %768 = vmatpush1.msra.mxu0 %v720
        %769 = vmatprep.subr.mxu0 0.0
        %770 = vmatpush2.msra.mxu0 0.0
        %771 = vmatprep.subr.mxu0 0.0
        %772 = vmatpush2.msra.mxu0 0.0
        %773 = vmatprep.subr.mxu0 0.0
        %774 = vmatpush2.msra.mxu0 0.0
        %775 = vmatprep.subr.mxu0 0.0
        %776 = vmatpush2.msra.mxu0 0.0
        %777 = vmatprep.subr.mxu0 0.0
        %778 = vmatpush2.msra.mxu0 0.0
        %779 = vmatprep.subr.mxu0 0.0
        %780 = vmatpush2.msra.mxu0 0.0
        %781 = vmatprep.subr.mxu0 0.0
        %782 = vmatpush2.msra.mxu0 0.0
        %783 = vmatprep.subr.mxu0 0.0
        %784 = vmatpush2.msra.mxu0 0.0
        %785 = vmatprep.subr.mxu0 0.0
        %786 = vmatpush2.msra.mxu0 0.0
        %787 = vmatprep.subr.mxu0 0.0
        %788 = vmatpush2.msra.mxu0 0.0
        %789 = vmatprep.subr.mxu0 0.0
        %790 = vmatpush2.msra.mxu0 0.0
        %791 = vmatprep.subr.mxu0 0.0
        %792 = vmatpush2.msra.mxu0 0.0
        %793 = vmatprep.subr.mxu0 0.0
        %794 = vmatpush2.msra.mxu0 0.0
        %795 = vmatprep.subr.mxu0 0.0
        %796 = vmatpush2.msra.mxu0 0.0
        %797 = vmatprep.subr.mxu0 0.0
        %798 = vmatpush2.msra.mxu0 0.0
        %799 = vmatprep.subr.mxu0 0.0
        %800 = vmatpush2.msra.mxu0 0.0
        %801 = vmatprep.mubr.f32.mxu0 0.0
        %802 = vmatmul.mubr.f32.gmra.mxu0 %v731
        %v803 = vpop.f32.mrf.mxu0
        %v804 = vadd.f32 %v727, %v803
        %v805 = vpop.f32.mrf.mxu0
        %806 = vdwg.mxu0
        %807 = vxpose.xlu0.b32.start [1/16] %v804, 128
        %808 = vxpose.xlu0.b32.cont [2/16] 0.0, 128
        %809 = vxpose.xlu0.b32.cont [3/16] 0.0, 128
        %810 = vxpose.xlu0.b32.cont [4/16] 0.0, 128
        %811 = vxpose.xlu0.b32.cont [5/16] 0.0, 128
        %812 = vxpose.xlu0.b32.cont [6/16] 0.0, 128
        %813 = vxpose.xlu0.b32.cont [7/16] 0.0, 128
        %814 = vxpose.xlu0.b32.cont [8/16] 0.0, 128
        %815 = vxpose.xlu0.b32.cont [9/16] 0.0, 128
        %816 = vxpose.xlu0.b32.cont [10/16] 0.0, 128
        %817 = vxpose.xlu0.b32.cont [11/16] 0.0, 128
        %818 = vxpose.xlu0.b32.cont [12/16] 0.0, 128
        %819 = vxpose.xlu0.b32.cont [13/16] 0.0, 128
        %820 = vxpose.xlu0.b32.cont [14/16] 0.0, 128
        %821 = vxpose.xlu0.b32.cont [15/16] 0.0, 128
        %822 = vxpose.xlu0.b32.end [16/16] 0.0, 128
        %v823 = vpop.trf.xlu0
        %v824 = vpop.trf.xlu0
        %v825 = vpop.trf.xlu0
        %v826 = vpop.trf.xlu0
        %v827 = vpop.trf.xlu0
        %v828 = vpop.trf.xlu0
        %v829 = vpop.trf.xlu0
        %v830 = vpop.trf.xlu0
        %v831 = vpop.trf.xlu0
        %v832 = vpop.trf.xlu0
        %v833 = vpop.trf.xlu0
        %v834 = vpop.trf.xlu0
        %v835 = vpop.trf.xlu0
        %v836 = vpop.trf.xlu0
        %v837 = vpop.trf.xlu0
        %v838 = vpop.trf.xlu0
        %839 = vst.msk [vmem:[%s370] sm:$0xff] %vm613, %v823
        %840 = vst.msk [vmem:[%s370 + $0x8] sm:$0xff] %vm613, %v824
        %p841 = scmp.lt.s32.totalorder %s22, 1
        %s842 = scalar_select %p841, %s22, 1
        %s843 = smul.addr %s842, 2
        %s844 = smul.addr %s843, 8
        %s845 = scalar_lea.vmem %s10, %s844
        // Predicated region
        $region65: #{encoder_cnn_forward.1} parent=59 // pred_check
          %p846 = pneg %p255
        $region66: #{encoder_cnn_forward.1} parent=59 // pred_check_branch
          %848 = sbr.rel (%p846) target = $region68
        $region67: #{encoder_cnn_forward.1} parent=59 // pred_region
          _
        $region68: #{encoder_cnn_forward.1} parent=59 // pred_fallthru
          _
      $region60: #{encoder_cnn_forward.1} parent=5 // pred_fallthru
        _
      %p849 = scmp.le.s32.totalorder 2, %s17
      // Predicated region
      $region69: #{encoder_cnn_forward.1} parent=5 // pred_check
        %p850 = pneg %p849
      $region70: #{encoder_cnn_forward.1} parent=5 // pred_check_branch
        %852 = sbr.rel (%p850) target = $region72
      $region71: #{encoder_cnn_forward.1} parent=5 // pred_region
        %s853 = ssub.s32 %s17, 2
        // Predicated region
        $region73: #{encoder_cnn_forward.1} parent=71 // pred_check
          %p854 = pneg %p261
        $region74: #{encoder_cnn_forward.1} parent=71 // pred_check_branch
          %856 = sbr.rel (%p854) target = $region76
        $region75: #{encoder_cnn_forward.1} parent=71 // pred_region
          %p857 = scmp.lt.s32.totalorder %s23, 1
          %s858 = scalar_select %p857, %s23, 1
          %s859 = smul.addr %s858, 2
          %s860 = smul.addr %s859, 8
          %s861 = scalar_lea.vmem %s10, %s860
        $region76: #{encoder_cnn_forward.1} parent=71 // pred_fallthru
          _
      $region72: #{encoder_cnn_forward.1} parent=5 // pred_fallthru
        _
    $region6: #{encoder_cnn_forward.1} parent=1 // loop_footer
      %s21 = sadd.s32 1, %s17
    $region7: #{encoder_cnn_forward.1} parent=1 // loop_footer_branch
      %16 = sbr.rel target = $region3
    $region8: #{encoder_cnn_forward.1} parent=1 // loop_exit
      _
    %862 = vsyncpa [#allocation3], 1
    %s863 = scalar_lea.sflag [#allocation3], 1
    %864 = vsyncpa %s863, 1

</llo_original>
